<compile_context>
chip_gen: v6e
topology: v6e:2x2x1
jax: 0.10.0
libtpu: 0.0.40
codegen_flags: <defaults>
</compile_context>

<pallas_src>
import functools

import jax
import jax.numpy as jnp
from jax.experimental import pallas as pl
from jax.experimental.pallas import tpu as pltpu

BN_EPS = 1e-5
LEAKY_SLOPE = 0.01          # torch.nn.LeakyReLU default
LANE = 128


# ---------------------------------------------------------------------------
# Pass 1: 3x3 conv as a single lane-dense matmul + per-block channel sum/sumsq
# ---------------------------------------------------------------------------
def _conv_stats_kernel(p_ref, w_ref, conv_ref, stats_ref):
    """
    p_ref     : (R, Kp)   im2col patches row-block (compute dtype, lane-dense)
    w_ref     : (Kp, Cp)  folded conv weights (same block every grid step)
    conv_ref  : (R, Cp)   conv output row-block (compute dtype, lane-dense)
    stats_ref : (8, Cp)   rows 0/1 = per-block [sum, sum-of-squares] (f32),
                          rows 2..7 zero (full-sublane, unmasked store)
    """
    acc = jnp.dot(p_ref[...], w_ref[...], preferred_element_type=jnp.float32)
    conv_ref[...] = acc.astype(conv_ref.dtype)

    s = jnp.sum(acc, axis=0, keepdims=True)
    ss = jnp.sum(acc * acc, axis=0, keepdims=True)
    pad = jnp.zeros((6, acc.shape[-1]), jnp.float32)
    stats_ref[...] = jnp.concatenate([s, ss, pad], axis=0)


# ---------------------------------------------------------------------------
# Sizing helpers (generation-aware)
# ---------------------------------------------------------------------------
def _round_up(x, m):
    return (x + m - 1) // m * m


def _vmem_limit_bytes():
    cap = 128 * 1024 * 1024
    try:
        info = pltpu.get_tpu_info()
        cap = int(getattr(info, "vmem_capacity_bytes", cap))
    except Exception:
        pass
    # ~40 MiB on v7x (64 MiB physical), ~80 MiB on v5e/v6e (128 MiB physical).
    return max(16 * 1024 * 1024, min(int(cap * 0.625), 96 * 1024 * 1024))


def _pick_row_block(total_rows, kp, cp, in_bytes, store_bytes, vmem_limit):
    """Largest multiple-of-8 row block whose pipeline working set fits the budget."""
    budget = int(vmem_limit * 0.6)                 # headroom for compiler scratch
    fixed = 2 * kp * cp * in_bytes + 2 * 8 * cp * 4          # weights + stats bufs
    per_row = (2 * kp * in_bytes                   # patches block, double-buffered
               + 2 * cp * store_bytes              # conv-out block, double-buffered
               + cp * 4)                           # f32 accumulator / temps
    r = max(8, (budget - fixed) // per_row)
    r = min(int(r) // 8 * 8, 8192)
    rows8 = _round_up(total_rows, 8)
    r = max(8, min(r, rows8))
    # Keep >= 2 grid steps when there is enough work (v7x has 2 TensorCores).
    if rows8 >= 1024 and pl.cdiv(rows8, r) < 2:
        r = _round_up(pl.cdiv(rows8, 2), 8)
    return r


# ---------------------------------------------------------------------------
# Wrapper
# ---------------------------------------------------------------------------
def conv_bn_lrelu(x_nchw, weight, bias, gamma, beta, *,
                  compute_dtype=jnp.bfloat16, row_block=None):
    """x: (N,Cin,H,W); weight: (Cout,Cin,3,3); bias/gamma/beta: (Cout,).

    compute_dtype: dtype of the MXU operands AND of the stored conv
    intermediate.  bf16 is recommended on all TPU generations (the v5e MXU is
    bf16-native); accumulation, BN statistics and the epilogue are always f32.
    Pass jnp.float32 for tight numerical parity with the f32 reference.
    """
    del bias  # cancelled exactly by training-mode BatchNorm mean subtraction
              # (re-add it if this block is ever run with running/eval stats)

    n, cin, h, w = x_nchw.shape
    cout = weight.shape[0]
    k = 9 * cin
    kp = _round_up(k, LANE)                  # lane-dense K
    cp = _round_up(cout, LANE)               # lane-dense output channels
    rows = n * h * w

    in_bytes = jnp.dtype(compute_dtype).itemsize
    store_dtype = compute_dtype              # bf16 halves the intermediate traffic
    store_bytes = jnp.dtype(store_dtype).itemsize

    vmem_limit = _vmem_limit_bytes()
    r = row_block if row_block is not None else _pick_row_block(
        rows, kp, cp, in_bytes, store_bytes, vmem_limit)
    r = max(8, _round_up(r, 8))
    rows_pad = _round_up(rows, r)
    grid = (rows_pad // r,)

    # ---- wrapper-side im2col (one fused XLA pass over the small input) ------
    # TODO(synk): for large-Cin layers, replace the 9x patches blow-up with a
    # halo-tiled band DMA of the zero-padded image inside the kernel.
    x_nhwc = jnp.transpose(x_nchw, (0, 2, 3, 1)).astype(compute_dtype)
    x_sp = jnp.pad(x_nhwc, ((0, 0), (1, 1), (1, 1), (0, 0)))
    taps = [x_sp[:, ky:ky + h, kx:kx + w, :] for ky in range(3) for kx in range(3)]
    patches = jnp.concatenate(taps, axis=-1).reshape(rows, k)
    patches = jnp.pad(patches, ((0, rows_pad - rows), (0, kp - k)))

    # (Cout,Cin,3,3) -> (ky,kx,Cin,Cout) -> (9*Cin,Cout), zero-padded to (Kp,Cp).
    w_mat = jnp.transpose(weight.astype(compute_dtype), (2, 3, 1, 0)).reshape(k, cout)
    w_mat = jnp.pad(w_mat, ((0, kp - k), (0, cp - cout)))

    cparams = pltpu.CompilerParams(
        dimension_semantics=("parallel",),
        vmem_limit_bytes=vmem_limit)

    # ---- pass 1: conv + per-block BN partials --------------------------------
    conv_pad, stats = pl.pallas_call(
        _conv_stats_kernel,
        grid=grid,
        in_specs=[
            pl.BlockSpec((r, kp), lambda i: (i, 0)),
            pl.BlockSpec((kp, cp), lambda i: (0, 0)),
        ],
        out_specs=[
            pl.BlockSpec((r, cp), lambda i: (i, 0)),
            pl.BlockSpec((None, 8, cp), lambda i: (i, 0, 0)),
        ],
        out_shape=[
            jax.ShapeDtypeStruct((rows_pad, cp), store_dtype),
            jax.ShapeDtypeStruct((grid[0], 8, cp), jnp.float32),
        ],
        compiler_params=cparams,
        cost_estimate=pl.CostEstimate(
            flops=2 * rows_pad * kp * cp,
            transcendentals=0,
            bytes_accessed=(patches.size * in_bytes + w_mat.size * in_bytes
                            + rows_pad * cp * store_bytes
                            + grid[0] * 8 * cp * 4)),
    )(patches, w_mat)

    # ---- finalize BN statistics (tiny per-channel math, real channels only) --
    totals = jnp.sum(stats[:, :2, :cout], axis=0)            # (2, Cout) f32
    count = jnp.float32(rows)
    mean = totals[0] / count
    var = jnp.maximum(totals[1] / count - mean * mean, 0.0)  # biased variance
    # NOTE: E[x^2]-mean^2 can cancel when |mean| >> std at production sizes; a
    # compensated / Welford-style combine of the per-block partials would go here.
    scale = gamma.astype(jnp.float32) * jax.lax.rsqrt(var + BN_EPS)
    shift = beta.astype(jnp.float32) - mean * scale

    # ---- BN affine + LeakyReLU fused into the slice + NHWC->NCHW transpose ---
    # Only the real rows / real Cout channels are ever read back and written.
    y = conv_pad[:rows, :cout].astype(jnp.float32) * scale + shift
    y = jnp.where(y >= 0, y, LEAKY_SLOPE * y)
    return jnp.transpose(y.reshape(n, h, w, cout), (0, 3, 1, 2))


# ---------------------------------------------------------------------------
# Pure-JAX reference (matches the PyTorch module in training mode)
# ---------------------------------------------------------------------------
def _reference(x_nchw, weight, bias, gamma, beta):
    out = jax.lax.conv_general_dilated(
        x_nchw.astype(jnp.float32), weight.astype(jnp.float32),
        window_strides=(1, 1), padding=((1, 1), (1, 1)),
        dimension_numbers=("NCHW", "OIHW", "NCHW"))
    out = out + bias.reshape(1, -1, 1, 1)
    mean = jnp.mean(out, axis=(0, 2, 3), keepdims=True)
    var = jnp.mean((out - mean) ** 2, axis=(0, 2, 3), keepdims=True)
    out = (out - mean) / jnp.sqrt(var + BN_EPS)
    out = out * gamma.reshape(1, -1, 1, 1) + beta.reshape(1, -1, 1, 1)
    return jnp.where(out >= 0, out, LEAKY_SLOPE * out)


if __name__ == "__main__":
    key = jax.random.PRNGKey(0)
    N, Cin, H, W = 2, 4, 16, 16
    Cout = 8

    k_x, k_w, k_b = jax.random.split(key, 3)
    x = jax.random.normal(k_x, (N, Cin, H, W), dtype=jnp.float32)

    # Deterministic init (shapes per nn.Conv2d(in, out, 3) / BatchNorm2d(out)).
    fan_in = Cin * 3 * 3
    bound = 1.0 / (fan_in ** 0.5)
    weight = jax.random.uniform(k_w, (Cout, Cin, 3, 3),
                                minval=-bound, maxval=bound, dtype=jnp.float32)
    bias = jax.random.uniform(k_b, (Cout,),
                              minval=-bound, maxval=bound, dtype=jnp.float32)
    gamma = jnp.ones((Cout,), jnp.float32)
    beta = jnp.zeros((Cout,), jnp.float32)

    ref = _reference(x, weight, bias, gamma, beta)

    # f32 MXU-operand / f32 intermediate path (tight parity with the module).
    f32_fn = jax.jit(functools.partial(conv_bn_lrelu, compute_dtype=jnp.float32))
    out = jax.block_until_ready(f32_fn(x, weight, bias, gamma, beta))
    assert out.shape == (N, Cout, H, W)
    assert jnp.allclose(out, ref, atol=1e-4, rtol=1e-4)

    # bf16 MXU-operand / bf16 intermediate path (recommended on v5e/v6e/v7x).
    # The intermediate is rounded to bf16 while stats come from the f32
    # accumulator -- a tiny, documented mismatch vs the f32 reference.
    bf16_fn = jax.jit(functools.partial(conv_bn_lrelu, compute_dtype=jnp.bfloat16))
    out_bf16 = jax.block_until_ready(bf16_fn(x, weight, bias, gamma, beta))
    assert out_bf16.shape == (N, Cout, H, W)
    assert jnp.allclose(out_bf16, ref, atol=1e-1)

    print("KERNEL_OK")
</pallas_src>

<mosaic_0001>
module attributes {stable_mosaic.version = 11 : i64} {
  func.func @_conv_stats_kernel(%arg0: i32, %arg1: memref<512x128xf32, #tpu.memory_space<vmem>>, %arg2: memref<128x128xf32, #tpu.memory_space<vmem>>, %arg3: memref<512x128xf32, #tpu.memory_space<vmem>>, %arg4: memref<1x8x128xf32, #tpu.memory_space<vmem>>) attributes {dimension_semantics = [#tpu.dimension_semantics<parallel>], iteration_bounds = array<i64: 1>, scalar_prefetch = 0 : i64, scratch_operands = 0 : i64, tpu.core_type = #tpu.core_type<tc>, window_params = [{transform_indices = @transform_0, window_bounds = array<i64: 512, 128>}, {pipeline_mode = #tpu.pipeline_mode<synchronous>, transform_indices = @transform_1, window_bounds = array<i64: 128, 128>}, {transform_indices = @transform_2, window_bounds = array<i64: 512, 128>}, {transform_indices = @transform_3, window_bounds = array<i64: 1, 8, 128>}]} {
    %c0 = arith.constant 0 : index
    %c0_0 = arith.constant 0 : index
    %0 = vector.load %arg1[%c0, %c0_0] : memref<512x128xf32, #tpu.memory_space<vmem>>, vector<512x128xf32>
    %c0_1 = arith.constant 0 : index
    %c0_2 = arith.constant 0 : index
    %1 = vector.load %arg2[%c0_1, %c0_2] : memref<128x128xf32, #tpu.memory_space<vmem>>, vector<128x128xf32>
    %cst = arith.constant dense<0.000000e+00> : vector<512x128xf32>
    %2 = tpu.matmul %0, %1, %cst {dimension_numbers = #tpu.dot_dimension_numbers<[1], [0], [0], [1], [0, 0, 1, 1], [], []>} : vector<512x128xf32>, vector<128x128xf32>, vector<512x128xf32> -> vector<512x128xf32>
    %c0_3 = arith.constant 0 : index
    %c0_4 = arith.constant 0 : index
    %3 = vector.load %arg3[%c0_3, %c0_4] : memref<512x128xf32, #tpu.memory_space<vmem>>, vector<512x128xf32>
    tpu.vector_store %arg3[%c0_3, %c0_4], %2 {strides = array<i32>} : memref<512x128xf32, #tpu.memory_space<vmem>>, vector<512x128xf32>,
    %cst_5 = arith.constant dense<0.000000e+00> : vector<128xf32>
    %4 = vector.multi_reduction <add>, %2, %cst_5 [0] : vector<512x128xf32> to vector<128xf32>
    %5 = vector.shape_cast %4 : vector<128xf32> to vector<1x128xf32>
    %6 = arith.mulf %2, %2 : vector<512x128xf32>
    %cst_6 = arith.constant dense<0.000000e+00> : vector<128xf32>
    %7 = vector.multi_reduction <add>, %6, %cst_6 [0] : vector<512x128xf32> to vector<128xf32>
    %8 = vector.shape_cast %7 : vector<128xf32> to vector<1x128xf32>
    %cst_7 = arith.constant 0.000000e+00 : f32
    %9 = vector.broadcast %cst_7 : f32 to vector<6x128xf32>
    %10 = tpu.concatenate %5, %8, %9 in 0 : vector<1x128xf32>, vector<1x128xf32>, vector<6x128xf32> -> vector<8x128xf32>
    %c0_8 = arith.constant 0 : index
    %c0_9 = arith.constant 0 : index
    %c0_10 = arith.constant 0 : index
    %11 = vector.load %arg4[%c0_8, %c0_9, %c0_10] : memref<1x8x128xf32, #tpu.memory_space<vmem>>, vector<1x8x128xf32>
    %12 = vector.shape_cast %11 : vector<1x8x128xf32> to vector<8x128xf32>
    %13 = vector.shape_cast %10 : vector<8x128xf32> to vector<1x8x128xf32>
    tpu.vector_store %arg4[%c0_8, %c0_9, %c0_10], %13 {strides = array<i32>} : memref<1x8x128xf32, #tpu.memory_space<vmem>>, vector<1x8x128xf32>,
    return
  }
  func.func @transform_0(%arg0: i32) -> (i32, i32) {
    %c0_i32 = arith.constant 0 : i32
    %c0_i32_0 = arith.constant 0 : i32
    return %arg0, %c0_i32 : i32, i32
  }
  func.func @transform_1(%arg0: i32) -> (i32, i32) {
    %c0_i32 = arith.constant 0 : i32
    %c0_i32_0 = arith.constant 0 : i32
    %c0_i32_1 = arith.constant 0 : i32
    return %c0_i32, %c0_i32_0 : i32, i32
  }
  func.func @transform_2(%arg0: i32) -> (i32, i32) {
    %c0_i32 = arith.constant 0 : i32
    %c0_i32_0 = arith.constant 0 : i32
    return %arg0, %c0_i32 : i32, i32
  }
  func.func @transform_3(%arg0: i32) -> (i32, i32, i32) {
    %c0_i32 = arith.constant 0 : i32
    %c0_i32_0 = arith.constant 0 : i32
    %c0_i32_1 = arith.constant 0 : i32
    return %arg0, %c0_i32, %c0_i32_0 : i32, i32, i32
  }
}

</mosaic_0001>

<llo_original>
// kernel: conv_bn_lrelu.1
$region0: #{conv_bn_lrelu.1}
  #allocation0 [shape = 'u32[]', space=smem, size = 0x4, offset = 0x4, fixed_abs, tag = 'smem constant byte address 0x4 - core index']
  #allocation1 [shape = 'u32[144,128]{1,0:T(1,128)}', space=vmem, size = 0x12000, scoped, tag = 'internal scratch']
  %s0 = inlined_call_operand.vmem [shape: f32[512,128], index: 0, kind: input, shape index: {}]
  %s1 = inlined_call_operand.vmem [shape: f32[128,128], index: 1, kind: input, shape index: {}]
  %s2 = inlined_call_operand.vmem [shape: f32[512,128], index: 2, kind: output, shape index: {0}]
  %s3 = inlined_call_operand.vmem [shape: f32[1,8,128], index: 3, kind: output, shape index: {1}]
  %4 = xla_tuple %s2, %s3
  %s5 = sld [smem:[#allocation0]]
  $region26: #{conv_bn_lrelu.1} parent=0
    _
  %s7 = ssub.s32 1, %s5
  %s8 = scalar_select 0, %s7, %s5
  // Predicated region
  $region2: #{conv_bn_lrelu.1} parent=0 // pred_check
    _
  $region3: #{conv_bn_lrelu.1} parent=0 // pred_check_branch
    %10 = sbr.rel (0) target = $region5
  $region4: #{conv_bn_lrelu.1} parent=0 // pred_region
    _
  $region5: #{conv_bn_lrelu.1} parent=0 // pred_fallthru
    _
  // Predicated region
  $region6: #{conv_bn_lrelu.1} parent=0 // pred_check
    _
  $region7: #{conv_bn_lrelu.1} parent=0 // pred_check_branch
    %12 = sbr.rel (0) target = $region9
  $region8: #{conv_bn_lrelu.1} parent=0 // pred_region
    _
  $region9: #{conv_bn_lrelu.1} parent=0 // pred_fallthru
    _
  %v13 = vld [vmem:[%s0] sm:$0xff]
  %v14 = vld [vmem:[%s0 + $0x8] sm:$0xff]
  %v15 = vld [vmem:[%s0 + $0x10] sm:$0xff]
  %v16 = vld [vmem:[%s0 + $0x18] sm:$0xff]
  %v17 = vld [vmem:[%s0 + $0x20] sm:$0xff]
  %v18 = vld [vmem:[%s0 + $0x28] sm:$0xff]
  %v19 = vld [vmem:[%s0 + $0x30] sm:$0xff]
  %v20 = vld [vmem:[%s0 + $0x38] sm:$0xff]
  %v21 = vld [vmem:[%s0 + $0x40] sm:$0xff]
  %v22 = vld [vmem:[%s0 + $0x48] sm:$0xff]
  %v23 = vld [vmem:[%s0 + $0x50] sm:$0xff]
  %v24 = vld [vmem:[%s0 + $0x58] sm:$0xff]
  %v25 = vld [vmem:[%s0 + $0x60] sm:$0xff]
  %v26 = vld [vmem:[%s0 + $0x68] sm:$0xff]
  %v27 = vld [vmem:[%s0 + $0x70] sm:$0xff]
  %v28 = vld [vmem:[%s0 + $0x78] sm:$0xff]
  %v29 = vld [vmem:[%s0 + $0x80] sm:$0xff]
  %v30 = vld [vmem:[%s0 + $0x88] sm:$0xff]
  %v31 = vld [vmem:[%s0 + $0x90] sm:$0xff]
  %v32 = vld [vmem:[%s0 + $0x98] sm:$0xff]
  %v33 = vld [vmem:[%s0 + $0xa0] sm:$0xff]
  %v34 = vld [vmem:[%s0 + $0xa8] sm:$0xff]
  %v35 = vld [vmem:[%s0 + $0xb0] sm:$0xff]
  %v36 = vld [vmem:[%s0 + $0xb8] sm:$0xff]
  %v37 = vld [vmem:[%s0 + $0xc0] sm:$0xff]
  %v38 = vld [vmem:[%s0 + $0xc8] sm:$0xff]
  %v39 = vld [vmem:[%s0 + $0xd0] sm:$0xff]
  %v40 = vld [vmem:[%s0 + $0xd8] sm:$0xff]
  %v41 = vld [vmem:[%s0 + $0xe0] sm:$0xff]
  %v42 = vld [vmem:[%s0 + $0xe8] sm:$0xff]
  %v43 = vld [vmem:[%s0 + $0xf0] sm:$0xff]
  %v44 = vld [vmem:[%s0 + $0xf8] sm:$0xff]
  %v45 = vld [vmem:[%s0 + $0x100] sm:$0xff]
  %v46 = vld [vmem:[%s0 + $0x108] sm:$0xff]
  %v47 = vld [vmem:[%s0 + $0x110] sm:$0xff]
  %v48 = vld [vmem:[%s0 + $0x118] sm:$0xff]
  %v49 = vld [vmem:[%s0 + $0x120] sm:$0xff]
  %v50 = vld [vmem:[%s0 + $0x128] sm:$0xff]
  %v51 = vld [vmem:[%s0 + $0x130] sm:$0xff]
  %v52 = vld [vmem:[%s0 + $0x138] sm:$0xff]
  %v53 = vld [vmem:[%s0 + $0x140] sm:$0xff]
  %v54 = vld [vmem:[%s0 + $0x148] sm:$0xff]
  %v55 = vld [vmem:[%s0 + $0x150] sm:$0xff]
  %v56 = vld [vmem:[%s0 + $0x158] sm:$0xff]
  %v57 = vld [vmem:[%s0 + $0x160] sm:$0xff]
  %v58 = vld [vmem:[%s0 + $0x168] sm:$0xff]
  %v59 = vld [vmem:[%s0 + $0x170] sm:$0xff]
  %v60 = vld [vmem:[%s0 + $0x178] sm:$0xff]
  %v61 = vld [vmem:[%s0 + $0x180] sm:$0xff]
  %v62 = vld [vmem:[%s0 + $0x188] sm:$0xff]
  %v63 = vld [vmem:[%s0 + $0x190] sm:$0xff]
  %v64 = vld [vmem:[%s0 + $0x198] sm:$0xff]
  %v65 = vld [vmem:[%s0 + $0x1a0] sm:$0xff]
  %v66 = vld [vmem:[%s0 + $0x1a8] sm:$0xff]
  %v67 = vld [vmem:[%s0 + $0x1b0] sm:$0xff]
  %v68 = vld [vmem:[%s0 + $0x1b8] sm:$0xff]
  %v69 = vld [vmem:[%s0 + $0x1c0] sm:$0xff]
  %v70 = vld [vmem:[%s0 + $0x1c8] sm:$0xff]
  %v71 = vld [vmem:[%s0 + $0x1d0] sm:$0xff]
  %v72 = vld [vmem:[%s0 + $0x1d8] sm:$0xff]
  %v73 = vld [vmem:[%s0 + $0x1e0] sm:$0xff]
  %v74 = vld [vmem:[%s0 + $0x1e8] sm:$0xff]
  %v75 = vld [vmem:[%s0 + $0x1f0] sm:$0xff]
  %v76 = vld [vmem:[%s0 + $0x1f8] sm:$0xff]
  %v77 = vld [vmem:[%s1] sm:$0xff]
  %v78 = vld [vmem:[%s1 + $0x8] sm:$0xff]
  %v79 = vld [vmem:[%s1 + $0x10] sm:$0xff]
  %v80 = vld [vmem:[%s1 + $0x18] sm:$0xff]
  %v81 = vld [vmem:[%s1 + $0x20] sm:$0xff]
  %v82 = vld [vmem:[%s1 + $0x28] sm:$0xff]
  %v83 = vld [vmem:[%s1 + $0x30] sm:$0xff]
  %v84 = vld [vmem:[%s1 + $0x38] sm:$0xff]
  %v85 = vld [vmem:[%s1 + $0x40] sm:$0xff]
  %v86 = vld [vmem:[%s1 + $0x48] sm:$0xff]
  %v87 = vld [vmem:[%s1 + $0x50] sm:$0xff]
  %v88 = vld [vmem:[%s1 + $0x58] sm:$0xff]
  %v89 = vld [vmem:[%s1 + $0x60] sm:$0xff]
  %v90 = vld [vmem:[%s1 + $0x68] sm:$0xff]
  %v91 = vld [vmem:[%s1 + $0x70] sm:$0xff]
  %v92 = vld [vmem:[%s1 + $0x78] sm:$0xff]
  %93 = vmatprep.subr.mxu0 0.0
  %94 = vmatpush1.msra.mxu0 %v92
  %95 = vmatprep.subr.mxu0 0.0
  %96 = vmatpush1.msra.mxu0 %v91
  %97 = vmatprep.subr.mxu0 0.0
  %98 = vmatpush1.msra.mxu0 %v90
  %99 = vmatprep.subr.mxu0 0.0
  %100 = vmatpush1.msra.mxu0 %v89
  %101 = vmatprep.subr.mxu0 0.0
  %102 = vmatpush1.msra.mxu0 %v88
  %103 = vmatprep.subr.mxu0 0.0
  %104 = vmatpush1.msra.mxu0 %v87
  %105 = vmatprep.subr.mxu0 0.0
  %106 = vmatpush1.msra.mxu0 %v86
  %107 = vmatprep.subr.mxu0 0.0
  %108 = vmatpush1.msra.mxu0 %v85
  %109 = vmatprep.subr.mxu0 0.0
  %110 = vmatpush1.msra.mxu0 %v84
  %111 = vmatprep.subr.mxu0 0.0
  %112 = vmatpush1.msra.mxu0 %v83
  %113 = vmatprep.subr.mxu0 0.0
  %114 = vmatpush1.msra.mxu0 %v82
  %115 = vmatprep.subr.mxu0 0.0
  %116 = vmatpush1.msra.mxu0 %v81
  %117 = vmatprep.subr.mxu0 0.0
  %118 = vmatpush1.msra.mxu0 %v80
  %119 = vmatprep.subr.mxu0 0.0
  %120 = vmatpush1.msra.mxu0 %v79
  %121 = vmatprep.subr.mxu0 0.0
  %122 = vmatpush1.msra.mxu0 %v78
  %123 = vmatprep.subr.mxu0 0.0
  %124 = vmatpush1.msra.mxu0 %v77
  %125 = vmatprep.subr.mxu0 0.0
  %126 = vmatpush2.msra.mxu0 0.0
  %127 = vmatprep.subr.mxu0 0.0
  %128 = vmatpush2.msra.mxu0 0.0
  %129 = vmatprep.subr.mxu0 0.0
  %130 = vmatpush2.msra.mxu0 0.0
  %131 = vmatprep.subr.mxu0 0.0
  %132 = vmatpush2.msra.mxu0 0.0
  %133 = vmatprep.subr.mxu0 0.0
  %134 = vmatpush2.msra.mxu0 0.0
  %135 = vmatprep.subr.mxu0 0.0
  %136 = vmatpush2.msra.mxu0 0.0
  %137 = vmatprep.subr.mxu0 0.0
  %138 = vmatpush2.msra.mxu0 0.0
  %139 = vmatprep.subr.mxu0 0.0
  %140 = vmatpush2.msra.mxu0 0.0
  %141 = vmatprep.subr.mxu0 0.0
  %142 = vmatpush2.msra.mxu0 0.0
  %143 = vmatprep.subr.mxu0 0.0
  %144 = vmatpush2.msra.mxu0 0.0
  %145 = vmatprep.subr.mxu0 0.0
  %146 = vmatpush2.msra.mxu0 0.0
  %147 = vmatprep.subr.mxu0 0.0
  %148 = vmatpush2.msra.mxu0 0.0
  %149 = vmatprep.subr.mxu0 0.0
  %150 = vmatpush2.msra.mxu0 0.0
  %151 = vmatprep.subr.mxu0 0.0
  %152 = vmatpush2.msra.mxu0 0.0
  %153 = vmatprep.subr.mxu0 0.0
  %154 = vmatpush2.msra.mxu0 0.0
  %155 = vmatprep.subr.mxu0 0.0
  %156 = vmatpush2.msra.mxu0 0.0
  %157 = vmatprep.mubr.f32.mxu0 0.0
  %158 = vmatmul.mubr.f32.gmra.mxu0 %v13
  %v159 = vpop.f32.mrf.mxu0
  %v160 = vadd.f32 0.0, %v159
  %v161 = vpop.f32.mrf.mxu0
  %162 = vmatprep.mubr.f32.mxu0 0.0
  %163 = vmatmul.mubr.f32.gmra.mxu0 %v14
  %v164 = vpop.f32.mrf.mxu0
  %v165 = vadd.f32 0.0, %v164
  %v166 = vpop.f32.mrf.mxu0
  %167 = vmatprep.mubr.f32.mxu0 0.0
  %168 = vmatmul.mubr.f32.gmra.mxu0 %v15
  %v169 = vpop.f32.mrf.mxu0
  %v170 = vadd.f32 0.0, %v169
  %v171 = vpop.f32.mrf.mxu0
  %172 = vmatprep.mubr.f32.mxu0 0.0
  %173 = vmatmul.mubr.f32.gmra.mxu0 %v16
  %v174 = vpop.f32.mrf.mxu0
  %v175 = vadd.f32 0.0, %v174
  %v176 = vpop.f32.mrf.mxu0
  %177 = vmatprep.mubr.f32.mxu0 0.0
  %178 = vmatmul.mubr.f32.gmra.mxu0 %v17
  %v179 = vpop.f32.mrf.mxu0
  %v180 = vadd.f32 0.0, %v179
  %v181 = vpop.f32.mrf.mxu0
  %182 = vmatprep.mubr.f32.mxu0 0.0
  %183 = vmatmul.mubr.f32.gmra.mxu0 %v18
  %v184 = vpop.f32.mrf.mxu0
  %v185 = vadd.f32 0.0, %v184
  %v186 = vpop.f32.mrf.mxu0
  %187 = vmatprep.mubr.f32.mxu0 0.0
  %188 = vmatmul.mubr.f32.gmra.mxu0 %v19
  %v189 = vpop.f32.mrf.mxu0
  %v190 = vadd.f32 0.0, %v189
  %v191 = vpop.f32.mrf.mxu0
  %192 = vmatprep.mubr.f32.mxu0 0.0
  %193 = vmatmul.mubr.f32.gmra.mxu0 %v20
  %v194 = vpop.f32.mrf.mxu0
  %v195 = vadd.f32 0.0, %v194
  %v196 = vpop.f32.mrf.mxu0
  %197 = vmatprep.mubr.f32.mxu0 0.0
  %198 = vmatmul.mubr.f32.gmra.mxu0 %v21
  %v199 = vpop.f32.mrf.mxu0
  %v200 = vadd.f32 0.0, %v199
  %v201 = vpop.f32.mrf.mxu0
  %202 = vmatprep.mubr.f32.mxu0 0.0
  %203 = vmatmul.mubr.f32.gmra.mxu0 %v22
  %v204 = vpop.f32.mrf.mxu0
  %v205 = vadd.f32 0.0, %v204
  %v206 = vpop.f32.mrf.mxu0
  %207 = vmatprep.mubr.f32.mxu0 0.0
  %208 = vmatmul.mubr.f32.gmra.mxu0 %v23
  %v209 = vpop.f32.mrf.mxu0
  %v210 = vadd.f32 0.0, %v209
  %v211 = vpop.f32.mrf.mxu0
  %212 = vmatprep.mubr.f32.mxu0 0.0
  %213 = vmatmul.mubr.f32.gmra.mxu0 %v24
  %v214 = vpop.f32.mrf.mxu0
  %v215 = vadd.f32 0.0, %v214
  %v216 = vpop.f32.mrf.mxu0
  %217 = vmatprep.mubr.f32.mxu0 0.0
  %218 = vmatmul.mubr.f32.gmra.mxu0 %v25
  %v219 = vpop.f32.mrf.mxu0
  %v220 = vadd.f32 0.0, %v219
  %v221 = vpop.f32.mrf.mxu0
  %222 = vmatprep.mubr.f32.mxu0 0.0
  %223 = vmatmul.mubr.f32.gmra.mxu0 %v26
  %v224 = vpop.f32.mrf.mxu0
  %v225 = vadd.f32 0.0, %v224
  %v226 = vpop.f32.mrf.mxu0
  %227 = vmatprep.mubr.f32.mxu0 0.0
  %228 = vmatmul.mubr.f32.gmra.mxu0 %v27
  %v229 = vpop.f32.mrf.mxu0
  %v230 = vadd.f32 0.0, %v229
  %v231 = vpop.f32.mrf.mxu0
  %232 = vmatprep.mubr.f32.mxu0 0.0
  %233 = vmatmul.mubr.f32.gmra.mxu0 %v28
  %v234 = vpop.f32.mrf.mxu0
  %v235 = vadd.f32 0.0, %v234
  %v236 = vpop.f32.mrf.mxu0
  %237 = vmatprep.mubr.f32.mxu0 0.0
  %238 = vmatmul.mubr.f32.gmra.mxu0 %v29
  %v239 = vpop.f32.mrf.mxu0
  %v240 = vadd.f32 0.0, %v239
  %v241 = vpop.f32.mrf.mxu0
  %242 = vmatprep.mubr.f32.mxu0 0.0
  %243 = vmatmul.mubr.f32.gmra.mxu0 %v30
  %v244 = vpop.f32.mrf.mxu0
  %v245 = vadd.f32 0.0, %v244
  %v246 = vpop.f32.mrf.mxu0
  %247 = vmatprep.mubr.f32.mxu0 0.0
  %248 = vmatmul.mubr.f32.gmra.mxu0 %v31
  %v249 = vpop.f32.mrf.mxu0
  %v250 = vadd.f32 0.0, %v249
  %v251 = vpop.f32.mrf.mxu0
  %252 = vmatprep.mubr.f32.mxu0 0.0
  %253 = vmatmul.mubr.f32.gmra.mxu0 %v32
  %v254 = vpop.f32.mrf.mxu0
  %v255 = vadd.f32 0.0, %v254
  %v256 = vpop.f32.mrf.mxu0
  %257 = vmatprep.mubr.f32.mxu0 0.0
  %258 = vmatmul.mubr.f32.gmra.mxu0 %v33
  %v259 = vpop.f32.mrf.mxu0
  %v260 = vadd.f32 0.0, %v259
  %v261 = vpop.f32.mrf.mxu0
  %262 = vmatprep.mubr.f32.mxu0 0.0
  %263 = vmatmul.mubr.f32.gmra.mxu0 %v34
  %v264 = vpop.f32.mrf.mxu0
  %v265 = vadd.f32 0.0, %v264
  %v266 = vpop.f32.mrf.mxu0
  %267 = vmatprep.mubr.f32.mxu0 0.0
  %268 = vmatmul.mubr.f32.gmra.mxu0 %v35
  %v269 = vpop.f32.mrf.mxu0
  %v270 = vadd.f32 0.0, %v269
  %v271 = vpop.f32.mrf.mxu0
  %272 = vmatprep.mubr.f32.mxu0 0.0
  %273 = vmatmul.mubr.f32.gmra.mxu0 %v36
  %v274 = vpop.f32.mrf.mxu0
  %v275 = vadd.f32 0.0, %v274
  %v276 = vpop.f32.mrf.mxu0
  %277 = vmatprep.mubr.f32.mxu0 0.0
  %278 = vmatmul.mubr.f32.gmra.mxu0 %v37
  %v279 = vpop.f32.mrf.mxu0
  %v280 = vadd.f32 0.0, %v279
  %v281 = vpop.f32.mrf.mxu0
  %282 = vmatprep.mubr.f32.mxu0 0.0
  %283 = vmatmul.mubr.f32.gmra.mxu0 %v38
  %v284 = vpop.f32.mrf.mxu0
  %v285 = vadd.f32 0.0, %v284
  %v286 = vpop.f32.mrf.mxu0
  %287 = vmatprep.mubr.f32.mxu0 0.0
  %288 = vmatmul.mubr.f32.gmra.mxu0 %v39
  %v289 = vpop.f32.mrf.mxu0
  %v290 = vadd.f32 0.0, %v289
  %v291 = vpop.f32.mrf.mxu0
  %292 = vmatprep.mubr.f32.mxu0 0.0
  %293 = vmatmul.mubr.f32.gmra.mxu0 %v40
  %v294 = vpop.f32.mrf.mxu0
  %v295 = vadd.f32 0.0, %v294
  %v296 = vpop.f32.mrf.mxu0
  %297 = vmatprep.mubr.f32.mxu0 0.0
  %298 = vmatmul.mubr.f32.gmra.mxu0 %v41
  %v299 = vpop.f32.mrf.mxu0
  %v300 = vadd.f32 0.0, %v299
  %v301 = vpop.f32.mrf.mxu0
  %302 = vmatprep.mubr.f32.mxu0 0.0
  %303 = vmatmul.mubr.f32.gmra.mxu0 %v42
  %v304 = vpop.f32.mrf.mxu0
  %v305 = vadd.f32 0.0, %v304
  %v306 = vpop.f32.mrf.mxu0
  %307 = vmatprep.mubr.f32.mxu0 0.0
  %308 = vmatmul.mubr.f32.gmra.mxu0 %v43
  %v309 = vpop.f32.mrf.mxu0
  %v310 = vadd.f32 0.0, %v309
  %v311 = vpop.f32.mrf.mxu0
  %312 = vmatprep.mubr.f32.mxu0 0.0
  %313 = vmatmul.mubr.f32.gmra.mxu0 %v44
  %v314 = vpop.f32.mrf.mxu0
  %v315 = vadd.f32 0.0, %v314
  %v316 = vpop.f32.mrf.mxu0
  %317 = vmatprep.mubr.f32.mxu0 0.0
  %318 = vmatmul.mubr.f32.gmra.mxu0 %v45
  %v319 = vpop.f32.mrf.mxu0
  %v320 = vadd.f32 0.0, %v319
  %v321 = vpop.f32.mrf.mxu0
  %322 = vmatprep.mubr.f32.mxu0 0.0
  %323 = vmatmul.mubr.f32.gmra.mxu0 %v46
  %v324 = vpop.f32.mrf.mxu0
  %v325 = vadd.f32 0.0, %v324
  %v326 = vpop.f32.mrf.mxu0
  %327 = vmatprep.mubr.f32.mxu0 0.0
  %328 = vmatmul.mubr.f32.gmra.mxu0 %v47
  %v329 = vpop.f32.mrf.mxu0
  %v330 = vadd.f32 0.0, %v329
  %v331 = vpop.f32.mrf.mxu0
  %332 = vmatprep.mubr.f32.mxu0 0.0
  %333 = vmatmul.mubr.f32.gmra.mxu0 %v48
  %v334 = vpop.f32.mrf.mxu0
  %v335 = vadd.f32 0.0, %v334
  %v336 = vpop.f32.mrf.mxu0
  %337 = vmatprep.mubr.f32.mxu0 0.0
  %338 = vmatmul.mubr.f32.gmra.mxu0 %v49
  %v339 = vpop.f32.mrf.mxu0
  %v340 = vadd.f32 0.0, %v339
  %v341 = vpop.f32.mrf.mxu0
  %342 = vmatprep.mubr.f32.mxu0 0.0
  %343 = vmatmul.mubr.f32.gmra.mxu0 %v50
  %v344 = vpop.f32.mrf.mxu0
  %v345 = vadd.f32 0.0, %v344
  %v346 = vpop.f32.mrf.mxu0
  %347 = vmatprep.mubr.f32.mxu0 0.0
  %348 = vmatmul.mubr.f32.gmra.mxu0 %v51
  %v349 = vpop.f32.mrf.mxu0
  %v350 = vadd.f32 0.0, %v349
  %v351 = vpop.f32.mrf.mxu0
  %352 = vmatprep.mubr.f32.mxu0 0.0
  %353 = vmatmul.mubr.f32.gmra.mxu0 %v52
  %v354 = vpop.f32.mrf.mxu0
  %v355 = vadd.f32 0.0, %v354
  %v356 = vpop.f32.mrf.mxu0
  %357 = vmatprep.mubr.f32.mxu0 0.0
  %358 = vmatmul.mubr.f32.gmra.mxu0 %v53
  %v359 = vpop.f32.mrf.mxu0
  %v360 = vadd.f32 0.0, %v359
  %v361 = vpop.f32.mrf.mxu0
  %362 = vmatprep.mubr.f32.mxu0 0.0
  %363 = vmatmul.mubr.f32.gmra.mxu0 %v54
  %v364 = vpop.f32.mrf.mxu0
  %v365 = vadd.f32 0.0, %v364
  %v366 = vpop.f32.mrf.mxu0
  %367 = vmatprep.mubr.f32.mxu0 0.0
  %368 = vmatmul.mubr.f32.gmra.mxu0 %v55
  %v369 = vpop.f32.mrf.mxu0
  %v370 = vadd.f32 0.0, %v369
  %v371 = vpop.f32.mrf.mxu0
  %372 = vmatprep.mubr.f32.mxu0 0.0
  %373 = vmatmul.mubr.f32.gmra.mxu0 %v56
  %v374 = vpop.f32.mrf.mxu0
  %v375 = vadd.f32 0.0, %v374
  %v376 = vpop.f32.mrf.mxu0
  %377 = vmatprep.mubr.f32.mxu0 0.0
  %378 = vmatmul.mubr.f32.gmra.mxu0 %v57
  %v379 = vpop.f32.mrf.mxu0
  %v380 = vadd.f32 0.0, %v379
  %v381 = vpop.f32.mrf.mxu0
  %382 = vmatprep.mubr.f32.mxu0 0.0
  %383 = vmatmul.mubr.f32.gmra.mxu0 %v58
  %v384 = vpop.f32.mrf.mxu0
  %v385 = vadd.f32 0.0, %v384
  %v386 = vpop.f32.mrf.mxu0
  %387 = vmatprep.mubr.f32.mxu0 0.0
  %388 = vmatmul.mubr.f32.gmra.mxu0 %v59
  %v389 = vpop.f32.mrf.mxu0
  %v390 = vadd.f32 0.0, %v389
  %v391 = vpop.f32.mrf.mxu0
  %392 = vmatprep.mubr.f32.mxu0 0.0
  %393 = vmatmul.mubr.f32.gmra.mxu0 %v60
  %v394 = vpop.f32.mrf.mxu0
  %v395 = vadd.f32 0.0, %v394
  %v396 = vpop.f32.mrf.mxu0
  %397 = vmatprep.mubr.f32.mxu0 0.0
  %398 = vmatmul.mubr.f32.gmra.mxu0 %v61
  %v399 = vpop.f32.mrf.mxu0
  %v400 = vadd.f32 0.0, %v399
  %v401 = vpop.f32.mrf.mxu0
  %402 = vmatprep.mubr.f32.mxu0 0.0
  %403 = vmatmul.mubr.f32.gmra.mxu0 %v62
  %v404 = vpop.f32.mrf.mxu0
  %v405 = vadd.f32 0.0, %v404
  %v406 = vpop.f32.mrf.mxu0
  %407 = vmatprep.mubr.f32.mxu0 0.0
  %408 = vmatmul.mubr.f32.gmra.mxu0 %v63
  %v409 = vpop.f32.mrf.mxu0
  %v410 = vadd.f32 0.0, %v409
  %v411 = vpop.f32.mrf.mxu0
  %412 = vmatprep.mubr.f32.mxu0 0.0
  %413 = vmatmul.mubr.f32.gmra.mxu0 %v64
  %v414 = vpop.f32.mrf.mxu0
  %v415 = vadd.f32 0.0, %v414
  %v416 = vpop.f32.mrf.mxu0
  %417 = vmatprep.mubr.f32.mxu0 0.0
  %418 = vmatmul.mubr.f32.gmra.mxu0 %v65
  %v419 = vpop.f32.mrf.mxu0
  %v420 = vadd.f32 0.0, %v419
  %v421 = vpop.f32.mrf.mxu0
  %422 = vmatprep.mubr.f32.mxu0 0.0
  %423 = vmatmul.mubr.f32.gmra.mxu0 %v66
  %v424 = vpop.f32.mrf.mxu0
  %v425 = vadd.f32 0.0, %v424
  %v426 = vpop.f32.mrf.mxu0
  %427 = vmatprep.mubr.f32.mxu0 0.0
  %428 = vmatmul.mubr.f32.gmra.mxu0 %v67
  %v429 = vpop.f32.mrf.mxu0
  %v430 = vadd.f32 0.0, %v429
  %v431 = vpop.f32.mrf.mxu0
  %432 = vmatprep.mubr.f32.mxu0 0.0
  %433 = vmatmul.mubr.f32.gmra.mxu0 %v68
  %v434 = vpop.f32.mrf.mxu0
  %v435 = vadd.f32 0.0, %v434
  %v436 = vpop.f32.mrf.mxu0
  %437 = vmatprep.mubr.f32.mxu0 0.0
  %438 = vmatmul.mubr.f32.gmra.mxu0 %v69
  %v439 = vpop.f32.mrf.mxu0
  %v440 = vadd.f32 0.0, %v439
  %v441 = vpop.f32.mrf.mxu0
  %442 = vmatprep.mubr.f32.mxu0 0.0
  %443 = vmatmul.mubr.f32.gmra.mxu0 %v70
  %v444 = vpop.f32.mrf.mxu0
  %v445 = vadd.f32 0.0, %v444
  %v446 = vpop.f32.mrf.mxu0
  %447 = vmatprep.mubr.f32.mxu0 0.0
  %448 = vmatmul.mubr.f32.gmra.mxu0 %v71
  %v449 = vpop.f32.mrf.mxu0
  %v450 = vadd.f32 0.0, %v449
  %v451 = vpop.f32.mrf.mxu0
  %452 = vmatprep.mubr.f32.mxu0 0.0
  %453 = vmatmul.mubr.f32.gmra.mxu0 %v72
  %v454 = vpop.f32.mrf.mxu0
  %v455 = vadd.f32 0.0, %v454
  %v456 = vpop.f32.mrf.mxu0
  %457 = vmatprep.mubr.f32.mxu0 0.0
  %458 = vmatmul.mubr.f32.gmra.mxu0 %v73
  %v459 = vpop.f32.mrf.mxu0
  %v460 = vadd.f32 0.0, %v459
  %v461 = vpop.f32.mrf.mxu0
  %462 = vmatprep.mubr.f32.mxu0 0.0
  %463 = vmatmul.mubr.f32.gmra.mxu0 %v74
  %v464 = vpop.f32.mrf.mxu0
  %v465 = vadd.f32 0.0, %v464
  %v466 = vpop.f32.mrf.mxu0
  %467 = vmatprep.mubr.f32.mxu0 0.0
  %468 = vmatmul.mubr.f32.gmra.mxu0 %v75
  %v469 = vpop.f32.mrf.mxu0
  %v470 = vadd.f32 0.0, %v469
  %v471 = vpop.f32.mrf.mxu0
  %472 = vmatprep.mubr.f32.mxu0 0.0
  %473 = vmatmul.mubr.f32.gmra.mxu0 %v76
  %v474 = vpop.f32.mrf.mxu0
  %v475 = vadd.f32 0.0, %v474
  %v476 = vpop.f32.mrf.mxu0
  %477 = vdwg.mxu0
  %478 = vst [vmem:[%s2] sm:$0xff] %v160
  %479 = vst [vmem:[%s2 + $0x8] sm:$0xff] %v165
  %480 = vst [vmem:[%s2 + $0x10] sm:$0xff] %v170
  %481 = vst [vmem:[%s2 + $0x18] sm:$0xff] %v175
  %482 = vst [vmem:[%s2 + $0x20] sm:$0xff] %v180
  %483 = vst [vmem:[%s2 + $0x28] sm:$0xff] %v185
  %484 = vst [vmem:[%s2 + $0x30] sm:$0xff] %v190
  %485 = vst [vmem:[%s2 + $0x38] sm:$0xff] %v195
  %486 = vst [vmem:[%s2 + $0x40] sm:$0xff] %v200
  %487 = vst [vmem:[%s2 + $0x48] sm:$0xff] %v205
  %488 = vst [vmem:[%s2 + $0x50] sm:$0xff] %v210
  %489 = vst [vmem:[%s2 + $0x58] sm:$0xff] %v215
  %490 = vst [vmem:[%s2 + $0x60] sm:$0xff] %v220
  %491 = vst [vmem:[%s2 + $0x68] sm:$0xff] %v225
  %492 = vst [vmem:[%s2 + $0x70] sm:$0xff] %v230
  %493 = vst [vmem:[%s2 + $0x78] sm:$0xff] %v235
  %494 = vst [vmem:[%s2 + $0x80] sm:$0xff] %v240
  %495 = vst [vmem:[%s2 + $0x88] sm:$0xff] %v245
  %496 = vst [vmem:[%s2 + $0x90] sm:$0xff] %v250
  %497 = vst [vmem:[%s2 + $0x98] sm:$0xff] %v255
  %498 = vst [vmem:[%s2 + $0xa0] sm:$0xff] %v260
  %499 = vst [vmem:[%s2 + $0xa8] sm:$0xff] %v265
  %500 = vst [vmem:[%s2 + $0xb0] sm:$0xff] %v270
  %501 = vst [vmem:[%s2 + $0xb8] sm:$0xff] %v275
  %502 = vst [vmem:[%s2 + $0xc0] sm:$0xff] %v280
  %503 = vst [vmem:[%s2 + $0xc8] sm:$0xff] %v285
  %504 = vst [vmem:[%s2 + $0xd0] sm:$0xff] %v290
  %505 = vst [vmem:[%s2 + $0xd8] sm:$0xff] %v295
  %506 = vst [vmem:[%s2 + $0xe0] sm:$0xff] %v300
  %507 = vst [vmem:[%s2 + $0xe8] sm:$0xff] %v305
  %508 = vst [vmem:[%s2 + $0xf0] sm:$0xff] %v310
  %509 = vst [vmem:[%s2 + $0xf8] sm:$0xff] %v315
  %510 = vst [vmem:[%s2 + $0x100] sm:$0xff] %v320
  %511 = vst [vmem:[%s2 + $0x108] sm:$0xff] %v325
  %512 = vst [vmem:[%s2 + $0x110] sm:$0xff] %v330
  %513 = vst [vmem:[%s2 + $0x118] sm:$0xff] %v335
  %514 = vst [vmem:[%s2 + $0x120] sm:$0xff] %v340
  %515 = vst [vmem:[%s2 + $0x128] sm:$0xff] %v345
  %516 = vst [vmem:[%s2 + $0x130] sm:$0xff] %v350
  %517 = vst [vmem:[%s2 + $0x138] sm:$0xff] %v355
  %518 = vst [vmem:[%s2 + $0x140] sm:$0xff] %v360
  %519 = vst [vmem:[%s2 + $0x148] sm:$0xff] %v365
  %520 = vst [vmem:[%s2 + $0x150] sm:$0xff] %v370
  %521 = vst [vmem:[%s2 + $0x158] sm:$0xff] %v375
  %522 = vst [vmem:[%s2 + $0x160] sm:$0xff] %v380
  %523 = vst [vmem:[%s2 + $0x168] sm:$0xff] %v385
  %524 = vst [vmem:[%s2 + $0x170] sm:$0xff] %v390
  %525 = vst [vmem:[%s2 + $0x178] sm:$0xff] %v395
  %526 = vst [vmem:[%s2 + $0x180] sm:$0xff] %v400
  %527 = vst [vmem:[%s2 + $0x188] sm:$0xff] %v405
  %528 = vst [vmem:[%s2 + $0x190] sm:$0xff] %v410
  %529 = vst [vmem:[%s2 + $0x198] sm:$0xff] %v415
  %530 = vst [vmem:[%s2 + $0x1a0] sm:$0xff] %v420
  %531 = vst [vmem:[%s2 + $0x1a8] sm:$0xff] %v425
  %532 = vst [vmem:[%s2 + $0x1b0] sm:$0xff] %v430
  %533 = vst [vmem:[%s2 + $0x1b8] sm:$0xff] %v435
  %534 = vst [vmem:[%s2 + $0x1c0] sm:$0xff] %v440
  %535 = vst [vmem:[%s2 + $0x1c8] sm:$0xff] %v445
  %536 = vst [vmem:[%s2 + $0x1d0] sm:$0xff] %v450
  %537 = vst [vmem:[%s2 + $0x1d8] sm:$0xff] %v455
  %538 = vst [vmem:[%s2 + $0x1e0] sm:$0xff] %v460
  %539 = vst [vmem:[%s2 + $0x1e8] sm:$0xff] %v465
  %540 = vst [vmem:[%s2 + $0x1f0] sm:$0xff] %v470
  %541 = vst [vmem:[%s2 + $0x1f8] sm:$0xff] %v475
  %v542 = vadd.f32 %v160, %v165
  %v543 = vadd.f32 %v542, %v170
  %v544 = vadd.f32 %v543, %v175
  %v545 = vadd.f32 %v544, %v180
  %v546 = vadd.f32 %v545, %v185
  %v547 = vadd.f32 %v546, %v190
  %v548 = vadd.f32 %v547, %v195
  %v549 = vadd.f32 %v548, %v200
  %v550 = vadd.f32 %v549, %v205
  %v551 = vadd.f32 %v550, %v210
  %v552 = vadd.f32 %v551, %v215
  %v553 = vadd.f32 %v552, %v220
  %v554 = vadd.f32 %v553, %v225
  %v555 = vadd.f32 %v554, %v230
  %v556 = vadd.f32 %v555, %v235
  %v557 = vadd.f32 %v556, %v240
  %v558 = vadd.f32 %v557, %v245
  %v559 = vadd.f32 %v558, %v250
  %v560 = vadd.f32 %v559, %v255
  %v561 = vadd.f32 %v560, %v260
  %v562 = vadd.f32 %v561, %v265
  %v563 = vadd.f32 %v562, %v270
  %v564 = vadd.f32 %v563, %v275
  %v565 = vadd.f32 %v564, %v280
  %v566 = vadd.f32 %v565, %v285
  %v567 = vadd.f32 %v566, %v290
  %v568 = vadd.f32 %v567, %v295
  %v569 = vadd.f32 %v568, %v300
  %v570 = vadd.f32 %v569, %v305
  %v571 = vadd.f32 %v570, %v310
  %v572 = vadd.f32 %v571, %v315
  %v573 = vadd.f32 %v572, %v320
  %v574 = vadd.f32 %v573, %v325
  %v575 = vadd.f32 %v574, %v330
  %v576 = vadd.f32 %v575, %v335
  %v577 = vadd.f32 %v576, %v340
  %v578 = vadd.f32 %v577, %v345
  %v579 = vadd.f32 %v578, %v350
  %v580 = vadd.f32 %v579, %v355
  %v581 = vadd.f32 %v580, %v360
  %v582 = vadd.f32 %v581, %v365
  %v583 = vadd.f32 %v582, %v370
  %v584 = vadd.f32 %v583, %v375
  %v585 = vadd.f32 %v584, %v380
  %v586 = vadd.f32 %v585, %v385
  %v587 = vadd.f32 %v586, %v390
  %v588 = vadd.f32 %v587, %v395
  %v589 = vadd.f32 %v588, %v400
  %v590 = vadd.f32 %v589, %v405
  %v591 = vadd.f32 %v590, %v410
  %v592 = vadd.f32 %v591, %v415
  %v593 = vadd.f32 %v592, %v420
  %v594 = vadd.f32 %v593, %v425
  %v595 = vadd.f32 %v594, %v430
  %v596 = vadd.f32 %v595, %v435
  %v597 = vadd.f32 %v596, %v440
  %v598 = vadd.f32 %v597, %v445
  %v599 = vadd.f32 %v598, %v450
  %v600 = vadd.f32 %v599, %v455
  %v601 = vadd.f32 %v600, %v460
  %v602 = vadd.f32 %v601, %v465
  %v603 = vadd.f32 %v602, %v470
  %v604 = vadd.f32 %v603, %v475
  %v605 = vrot.slane %v604, 4
  %v606 = vadd.f32 %v604, %v605
  %v607 = vrot.slane %v606, 2
  %v608 = vadd.f32 %v606, %v607
  %v609 = vrot.slane %v608, 1
  %v610 = vadd.f32 %v608, %v609
  %v611 = vmul.f32 %v160, %v160
  %v612 = vmul.f32 %v165, %v165
  %v613 = vmul.f32 %v170, %v170
  %v614 = vmul.f32 %v175, %v175
  %v615 = vmul.f32 %v180, %v180
  %v616 = vmul.f32 %v185, %v185
  %v617 = vmul.f32 %v190, %v190
  %v618 = vmul.f32 %v195, %v195
  %v619 = vmul.f32 %v200, %v200
  %v620 = vmul.f32 %v205, %v205
  %v621 = vmul.f32 %v210, %v210
  %v622 = vmul.f32 %v215, %v215
  %v623 = vmul.f32 %v220, %v220
  %v624 = vmul.f32 %v225, %v225
  %v625 = vmul.f32 %v230, %v230
  %v626 = vmul.f32 %v235, %v235
  %v627 = vmul.f32 %v240, %v240
  %v628 = vmul.f32 %v245, %v245
  %v629 = vmul.f32 %v250, %v250
  %v630 = vmul.f32 %v255, %v255
  %v631 = vmul.f32 %v260, %v260
  %v632 = vmul.f32 %v265, %v265
  %v633 = vmul.f32 %v270, %v270
  %v634 = vmul.f32 %v275, %v275
  %v635 = vmul.f32 %v280, %v280
  %v636 = vmul.f32 %v285, %v285
  %v637 = vmul.f32 %v290, %v290
  %v638 = vmul.f32 %v295, %v295
  %v639 = vmul.f32 %v300, %v300
  %v640 = vmul.f32 %v305, %v305
  %v641 = vmul.f32 %v310, %v310
  %v642 = vmul.f32 %v315, %v315
  %v643 = vmul.f32 %v320, %v320
  %v644 = vmul.f32 %v325, %v325
  %v645 = vmul.f32 %v330, %v330
  %v646 = vmul.f32 %v335, %v335
  %v647 = vmul.f32 %v340, %v340
  %v648 = vmul.f32 %v345, %v345
  %v649 = vmul.f32 %v350, %v350
  %v650 = vmul.f32 %v355, %v355
  %v651 = vmul.f32 %v360, %v360
  %v652 = vmul.f32 %v365, %v365
  %v653 = vmul.f32 %v370, %v370
  %v654 = vmul.f32 %v375, %v375
  %v655 = vmul.f32 %v380, %v380
  %v656 = vmul.f32 %v385, %v385
  %v657 = vmul.f32 %v390, %v390
  %v658 = vmul.f32 %v395, %v395
  %v659 = vmul.f32 %v400, %v400
  %v660 = vmul.f32 %v405, %v405
  %v661 = vmul.f32 %v410, %v410
  %v662 = vmul.f32 %v415, %v415
  %v663 = vmul.f32 %v420, %v420
  %v664 = vmul.f32 %v425, %v425
  %v665 = vmul.f32 %v430, %v430
  %v666 = vmul.f32 %v435, %v435
  %v667 = vmul.f32 %v440, %v440
  %v668 = vmul.f32 %v445, %v445
  %v669 = vmul.f32 %v450, %v450
  %v670 = vmul.f32 %v455, %v455
  %v671 = vmul.f32 %v460, %v460
  %v672 = vmul.f32 %v465, %v465
  %v673 = vmul.f32 %v470, %v470
  %v674 = vmul.f32 %v475, %v475
  %v675 = vadd.f32 %v611, %v612
  %v676 = vadd.f32 %v675, %v613
  %v677 = vadd.f32 %v676, %v614
  %v678 = vadd.f32 %v677, %v615
  %v679 = vadd.f32 %v678, %v616
  %v680 = vadd.f32 %v679, %v617
  %v681 = vadd.f32 %v680, %v618
  %v682 = vadd.f32 %v681, %v619
  %v683 = vadd.f32 %v682, %v620
  %v684 = vadd.f32 %v683, %v621
  %v685 = vadd.f32 %v684, %v622
  %v686 = vadd.f32 %v685, %v623
  %v687 = vadd.f32 %v686, %v624
  %v688 = vadd.f32 %v687, %v625
  %v689 = vadd.f32 %v688, %v626
  %v690 = vadd.f32 %v689, %v627
  %v691 = vadd.f32 %v690, %v628
  %v692 = vadd.f32 %v691, %v629
  %v693 = vadd.f32 %v692, %v630
  %v694 = vadd.f32 %v693, %v631
  %v695 = vadd.f32 %v694, %v632
  %v696 = vadd.f32 %v695, %v633
  %v697 = vadd.f32 %v696, %v634
  %v698 = vadd.f32 %v697, %v635
  %v699 = vadd.f32 %v698, %v636
  %v700 = vadd.f32 %v699, %v637
  %v701 = vadd.f32 %v700, %v638
  %v702 = vadd.f32 %v701, %v639
  %v703 = vadd.f32 %v702, %v640
  %v704 = vadd.f32 %v703, %v641
  %v705 = vadd.f32 %v704, %v642
  %v706 = vadd.f32 %v705, %v643
  %v707 = vadd.f32 %v706, %v644
  %v708 = vadd.f32 %v707, %v645
  %v709 = vadd.f32 %v708, %v646
  %v710 = vadd.f32 %v709, %v647
  %v711 = vadd.f32 %v710, %v648
  %v712 = vadd.f32 %v711, %v649
  %v713 = vadd.f32 %v712, %v650
  %v714 = vadd.f32 %v713, %v651
  %v715 = vadd.f32 %v714, %v652
  %v716 = vadd.f32 %v715, %v653
  %v717 = vadd.f32 %v716, %v654
  %v718 = vadd.f32 %v717, %v655
  %v719 = vadd.f32 %v718, %v656
  %v720 = vadd.f32 %v719, %v657
  %v721 = vadd.f32 %v720, %v658
  %v722 = vadd.f32 %v721, %v659
  %v723 = vadd.f32 %v722, %v660
  %v724 = vadd.f32 %v723, %v661
  %v725 = vadd.f32 %v724, %v662
  %v726 = vadd.f32 %v725, %v663
  %v727 = vadd.f32 %v726, %v664
  %v728 = vadd.f32 %v727, %v665
  %v729 = vadd.f32 %v728, %v666
  %v730 = vadd.f32 %v729, %v667
  %v731 = vadd.f32 %v730, %v668
  %v732 = vadd.f32 %v731, %v669
  %v733 = vadd.f32 %v732, %v670
  %v734 = vadd.f32 %v733, %v671
  %v735 = vadd.f32 %v734, %v672
  %v736 = vadd.f32 %v735, %v673
  %v737 = vadd.f32 %v736, %v674
  %v738 = vrot.slane %v737, 4
  %v739 = vadd.f32 %v737, %v738
  %v740 = vrot.slane %v739, 2
  %v741 = vadd.f32 %v739, %v740
  %v742 = vrot.slane %v741, 1
  %v743 = vadd.f32 %v741, %v742
  %vm744 = vcmask 1040384
  %v745 = vsel %vm744, %v610, %v743
  %vm746 = vcmask 1041408
  %v747 = vsel %vm746, %v745, 0.0
  %748 = vst [vmem:[%s3] sm:$0xff] %v747
  // Predicated region
  $region10: #{conv_bn_lrelu.1} parent=0 // pred_check
    _
  $region11: #{conv_bn_lrelu.1} parent=0 // pred_check_branch
    %750 = sbr.rel (0) target = $region13
  $region12: #{conv_bn_lrelu.1} parent=0 // pred_region
    _
  $region13: #{conv_bn_lrelu.1} parent=0 // pred_fallthru
    _
  // Predicated region
  $region14: #{conv_bn_lrelu.1} parent=0 // pred_check
    _
  $region15: #{conv_bn_lrelu.1} parent=0 // pred_check_branch
    %752 = sbr.rel (0) target = $region17
  $region16: #{conv_bn_lrelu.1} parent=0 // pred_region
    _
  $region17: #{conv_bn_lrelu.1} parent=0 // pred_fallthru
    _
  // Predicated region
  $region18: #{conv_bn_lrelu.1} parent=0 // pred_check
    _
  $region19: #{conv_bn_lrelu.1} parent=0 // pred_check_branch
    %754 = sbr.rel (0) target = $region21
  $region20: #{conv_bn_lrelu.1} parent=0 // pred_region
    _
  $region21: #{conv_bn_lrelu.1} parent=0 // pred_fallthru
    _
  // Predicated region
  $region22: #{conv_bn_lrelu.1} parent=0 // pred_check
    _
  $region23: #{conv_bn_lrelu.1} parent=0 // pred_check_branch
    %756 = sbr.rel (0) target = $region25
  $region24: #{conv_bn_lrelu.1} parent=0 // pred_region
    _
  $region25: #{conv_bn_lrelu.1} parent=0 // pred_fallthru
    _

</llo_original>
